<compile_context>
chip_gen: v6e
topology: v6e:2x2x1
jax: 0.10.0
libtpu: 0.0.40
codegen_flags: <defaults>
</compile_context>

<pallas_src>
import functools
import math

import jax
import jax.numpy as jnp
from jax.experimental import pallas as pl
from jax.experimental.pallas import tpu as pltpu


_LANES = 128
_SPLIT_D = 16384          # D above this -> split-reduction path
_SPLIT_TK = 8192          # lane tile for the split path (multiple of 128)
_MAX_FOLD_WIDTH = 4096    # max folded row width (lanes) for the lane-dense path


def _round_up(a, b):
    return -(-a // b) * b


def _round_down(a, b):
    return (a // b) * b


def _sublane(dtype):
    # f32 -> 8, bf16/f16 -> 16, int8/fp8 -> 32 (sub-32-bit packs along sublanes).
    return max(8, 32 // jnp.dtype(dtype).itemsize)


@functools.lru_cache(maxsize=None)
def _budgets():
    """(input-block byte budget, vmem_limit_bytes), tuned per TPU generation."""
    cap = None
    try:
        cap = getattr(pltpu.get_tpu_info(), "vmem_capacity_bytes", None)
    except Exception:
        cap = None
    if cap is None:
        cap = 64 * 1024 * 1024
    if cap >= 100 * 1024 * 1024:
        # v5e / v6e: 128 MiB physical VMEM -> big blocks, generous scoped limit.
        return 16 * 1024 * 1024, 96 * 1024 * 1024
    # v7x: 64 MiB physical VMEM -> keep 2x(double-buffered block) well under it.
    return 8 * 1024 * 1024, 48 * 1024 * 1024


def _pick_row_tile(n_rows, row_bytes, sublane, block_budget):
    """Rows per block: fill the budget, dtype-aligned, keep >=2 row blocks."""
    if n_rows <= sublane:
        return n_rows                               # full-dim block is always legal
    budget = max(sublane, _round_down(max(1, block_budget // row_bytes), sublane))
    half = _round_up((n_rows + 1) // 2, sublane)    # >=2 grid steps (v7x megacore)
    return max(sublane, min(budget, half, _round_up(n_rows, sublane)))


# --------------------------------------------------------------------------
# Kernels
# --------------------------------------------------------------------------
def _folded_kernel(x_ref, ones_ref, o_ref):
    # x_ref: (tm, width) lane-dense, width = fold*d; ones_ref: (width, fold) 0/1.
    # The segmented lane reduction rides the otherwise-idle MXU.
    s = jnp.abs(x_ref[...].astype(jnp.float32))
    o_ref[...] = jnp.dot(
        s, ones_ref[...],
        preferred_element_type=jnp.float32,
        precision=jax.lax.Precision.HIGHEST,
    ).astype(o_ref.dtype)


def _simple_kernel(x_ref, o_ref):
    # x_ref: (tm, D); o_ref: (tm, 1)
    s = jnp.abs(x_ref[...].astype(jnp.float32))
    o_ref[...] = jnp.sum(s, axis=-1, keepdims=True).astype(o_ref.dtype)


def _split_kernel(x_ref, o_ref, acc_ref, *, d_total, tk, nk_chunk, has_tail):
    # x_ref: (tm, tk) slice of D; acc_ref: (tm, 1) f32; o_ref: (1, tm, 1) f32.
    # Grid: (row_block i, D super-chunk c [parallel], k within chunk [arbitrary]).
    c = pl.program_id(1)
    k = pl.program_id(2)

    @pl.when(k == 0)
    def _():
        acc_ref[...] = jnp.zeros_like(acc_ref)

    s = jnp.abs(x_ref[...].astype(jnp.float32))

    if has_tail:
        start = (c * nk_chunk + k) * tk          # logical column offset of block
        needs_mask = (start + tk) > d_total      # only the tail / OOB blocks

        @pl.when(needs_mask)
        def _():
            col = jax.lax.broadcasted_iota(jnp.int32, (1, s.shape[1]), 1) + start
            acc_ref[...] += jnp.sum(jnp.where(col < d_total, s, 0.0),
                                    axis=-1, keepdims=True)

        @pl.when(jnp.logical_not(needs_mask))
        def _():
            acc_ref[...] += jnp.sum(s, axis=-1, keepdims=True)
    else:
        acc_ref[...] += jnp.sum(s, axis=-1, keepdims=True)

    @pl.when(k == pl.num_programs(2) - 1)
    def _():
        o_ref[...] = acc_ref[...][None, :, :]


# --------------------------------------------------------------------------
# Wrapper
# --------------------------------------------------------------------------
def manhattan_norm(x: jax.Array) -> jax.Array:
    """sum(|x|) over the last axis, matching torch.sum(torch.abs(x), dim=-1)."""
    orig_shape = x.shape
    d = orig_shape[-1]
    lead = orig_shape[:-1]
    m = 1
    for s in lead:
        m *= s

    if m == 0 or d == 0:
        return jnp.zeros(lead, dtype=x.dtype)

    x2d = x.reshape(m, d)
    itemsize = jnp.dtype(x.dtype).itemsize
    sublane = _sublane(x.dtype)
    block_budget, vmem_limit = _budgets()

    def cparams(sem):
        return pltpu.CompilerParams(dimension_semantics=sem,
                                    vmem_limit_bytes=vmem_limit)

    # --- Path 1: lane-dense fold for small / non-128-multiple D.
    # fold = 128/gcd(D,128) logical rows share one 128-lane-dense row.
    fold = _LANES // math.gcd(d, _LANES)
    width = fold * d
    if fold > 1 and width <= _MAX_FOLD_WIDTH and m % fold == 0:
        mf = m // fold
        xf = x2d.reshape(mf, width)               # free row-major re-view
        seg = jnp.repeat(jnp.arange(fold, dtype=jnp.int32), d)
        ones_mat = (seg[:, None] == jnp.arange(fold, dtype=jnp.int32)[None, :]
                    ).astype(jnp.float32)         # (width, fold) block-diag 0/1
        tm = _pick_row_tile(mf, width * itemsize, sublane, block_budget)
        grid = (pl.cdiv(mf, tm),)
        out = pl.pallas_call(
            _folded_kernel,
            out_shape=jax.ShapeDtypeStruct((mf, fold), x.dtype),
            grid_spec=pltpu.PrefetchScalarGridSpec(
                num_scalar_prefetch=0,
                grid=grid,
                in_specs=[pl.BlockSpec((tm, width), lambda i: (i, 0)),
                          pl.BlockSpec((width, fold), lambda i: (0, 0))],
                out_specs=pl.BlockSpec((tm, fold), lambda i: (i, 0)),
            ),
            compiler_params=cparams(("parallel",)),
        )(xf, ones_mat)
        return out.reshape(lead)

    # --- Path 2: full-D row blocks (no reduction split needed).
    if d <= _SPLIT_D:
        row_bytes = max(d, _LANES) * itemsize     # account for lane padding
        tm = _pick_row_tile(m, row_bytes, sublane, block_budget)
        grid = (pl.cdiv(m, tm),)
        out = pl.pallas_call(
            _simple_kernel,
            out_shape=jax.ShapeDtypeStruct((m, 1), x.dtype),
            grid_spec=pltpu.PrefetchScalarGridSpec(
                num_scalar_prefetch=0,
                grid=grid,
                in_specs=[pl.BlockSpec((tm, d), lambda i: (i, 0))],
                out_specs=pl.BlockSpec((tm, 1), lambda i: (i, 0)),
            ),
            compiler_params=cparams(("parallel",)),
        )(x2d)
        return out.reshape(lead)

    # --- Path 3: huge D -> split the reduction axis with an f32 accumulator.
    # tk is decoupled from the block budget so tm can grow; when the row axis
    # collapses to one block (tiny m) the D axis is split into 2 parallel
    # super-chunks so v7x's second TensorCore participates.
    tk = _SPLIT_TK
    nk = pl.cdiv(d, tk)
    tm = _pick_row_tile(m, tk * itemsize, sublane, block_budget)
    grid_m = pl.cdiv(m, tm)
    n_chunks = 2 if (grid_m == 1 and nk >= 2) else 1
    nk_chunk = pl.cdiv(nk, n_chunks)
    has_tail = (nk_chunk * n_chunks * tk) != d

    out = pl.pallas_call(
        functools.partial(_split_kernel, d_total=d, tk=tk,
                          nk_chunk=nk_chunk, has_tail=has_tail),
        out_shape=jax.ShapeDtypeStruct((n_chunks, m, 1), jnp.float32),
        grid_spec=pltpu.PrefetchScalarGridSpec(
            num_scalar_prefetch=0,
            grid=(grid_m, n_chunks, nk_chunk),
            in_specs=[pl.BlockSpec((tm, tk),
                                   lambda i, c, k: (i, c * nk_chunk + k))],
            out_specs=pl.BlockSpec((1, tm, 1), lambda i, c, k: (c, i, 0)),
            scratch_shapes=[pltpu.VMEM((tm, 1), jnp.float32)],
        ),
        compiler_params=cparams(("parallel", "parallel", "arbitrary")),
    )(x2d)
    res = jnp.sum(out[:, :, 0], axis=0).astype(x.dtype)   # tiny wrapper-side add
    return res.reshape(lead)


if __name__ == "__main__":
    key = jax.random.PRNGKey(0)
    k1, k2, k3, k4, k5 = jax.random.split(key, 5)

    # Primary shape from the module spec: (batch=2, seq=8, hidden=32) -> fold=4.
    x1 = jax.random.normal(k1, (2, 8, 32), dtype=jnp.float32)
    out1 = jax.block_until_ready(manhattan_norm(x1))
    ref1 = jnp.sum(jnp.abs(x1), axis=-1)
    assert out1.shape == ref1.shape == (2, 8)
    assert jnp.allclose(out1, ref1, atol=1e-3, rtol=1e-4)

    # D=100 (not a divisor of 128): generalized lcm fold (width=3200, fold=32).
    x2 = jax.random.normal(k2, (4, 16, 100), dtype=jnp.float32)
    out2 = jax.block_until_ready(manhattan_norm(x2))
    ref2 = jnp.sum(jnp.abs(x2), axis=-1)
    assert out2.shape == ref2.shape == (4, 16)
    assert jnp.allclose(out2, ref2, atol=1e-3, rtol=1e-4)

    # D multiple of 128 -> full-D row-block path.
    x4 = jax.random.normal(k4, (4, 8, 256), dtype=jnp.float32)
    out4 = jax.block_until_ready(manhattan_norm(x4))
    ref4 = jnp.sum(jnp.abs(x4), axis=-1)
    assert out4.shape == ref4.shape == (4, 8)
    assert jnp.allclose(out4, ref4, atol=1e-4, rtol=1e-5)

    # bf16 input: exercises dtype-aware sublane alignment (tm multiple of 16).
    x5 = jax.random.normal(k5, (2, 64, 512), dtype=jnp.bfloat16)
    out5 = jax.block_until_ready(manhattan_norm(x5))
    ref5 = jnp.sum(jnp.abs(x5.astype(jnp.float32)), axis=-1)
    assert out5.shape == ref5.shape == (2, 64)
    assert jnp.allclose(out5.astype(jnp.float32), ref5, atol=1.0, rtol=1e-2)

    # Huge D, tiny m -> split reduction with 2 parallel D super-chunks + tail mask.
    x3 = jax.random.normal(k3, (8, 70000), dtype=jnp.float32)
    out3 = jax.block_until_ready(manhattan_norm(x3))
    ref3 = jnp.sum(jnp.abs(x3), axis=-1)
    assert out3.shape == ref3.shape == (8,)
    assert jnp.allclose(out3, ref3, atol=1e-2, rtol=1e-4)

    print("KERNEL_OK")
</pallas_src>

<mosaic_0001>
module attributes {stable_mosaic.version = 11 : i64} {
  func.func @_folded_kernel(%arg0: i32, %arg1: memref<4x128xf32, #tpu.memory_space<vmem>>, %arg2: memref<128x4xf32, #tpu.memory_space<vmem>>, %arg3: memref<4x4xf32, #tpu.memory_space<vmem>>) attributes {dimension_semantics = [#tpu.dimension_semantics<parallel>], iteration_bounds = array<i64: 1>, scalar_prefetch = 0 : i64, scratch_operands = 0 : i64, tpu.core_type = #tpu.core_type<tc>, window_params = [{transform_indices = @transform_0, window_bounds = array<i64: 4, 128>}, {pipeline_mode = #tpu.pipeline_mode<synchronous>, transform_indices = @transform_1, window_bounds = array<i64: 128, 4>}, {transform_indices = @transform_2, window_bounds = array<i64: 4, 4>}]} {
    %c0 = arith.constant 0 : index
    %c0_0 = arith.constant 0 : index
    %0 = vector.load %arg1[%c0, %c0_0] : memref<4x128xf32, #tpu.memory_space<vmem>>, vector<4x128xf32>
    %1 = math.absf %0 : vector<4x128xf32>
    %c0_1 = arith.constant 0 : index
    %c0_2 = arith.constant 0 : index
    %2 = vector.load %arg2[%c0_1, %c0_2] : memref<128x4xf32, #tpu.memory_space<vmem>>, vector<128x4xf32>
    %cst = arith.constant dense<0.000000e+00> : vector<4x4xf32>
    %3 = tpu.matmul %1, %2, %cst {dimension_numbers = #tpu.dot_dimension_numbers<[1], [0], [0], [1], [0, 0, 1, 1], [], []>, precision = #tpu.contract_precision<fp32>} : vector<4x128xf32>, vector<128x4xf32>, vector<4x4xf32> -> vector<4x4xf32>
    %c0_3 = arith.constant 0 : index
    %c0_4 = arith.constant 0 : index
    %4 = vector.load %arg3[%c0_3, %c0_4] : memref<4x4xf32, #tpu.memory_space<vmem>>, vector<4x4xf32>
    tpu.vector_store %arg3[%c0_3, %c0_4], %3 {strides = array<i32>} : memref<4x4xf32, #tpu.memory_space<vmem>>, vector<4x4xf32>,
    return
  }
  func.func @transform_0(%arg0: i32) -> (i32, i32) {
    %c0_i32 = arith.constant 0 : i32
    %c0_i32_0 = arith.constant 0 : i32
    return %arg0, %c0_i32 : i32, i32
  }
  func.func @transform_1(%arg0: i32) -> (i32, i32) {
    %c0_i32 = arith.constant 0 : i32
    %c0_i32_0 = arith.constant 0 : i32
    %c0_i32_1 = arith.constant 0 : i32
    return %c0_i32, %c0_i32_0 : i32, i32
  }
  func.func @transform_2(%arg0: i32) -> (i32, i32) {
    %c0_i32 = arith.constant 0 : i32
    %c0_i32_0 = arith.constant 0 : i32
    return %arg0, %c0_i32 : i32, i32
  }
}

</mosaic_0001>

<llo_original>
// kernel: tpu_custom_call.1
$region0: #{tpu_custom_call.1}
  #allocation0 [shape = 'u32[]', space=smem, size = 0x4, offset = 0x4, fixed_abs, tag = 'smem constant byte address 0x4 - core index']
  #allocation1 [shape = 'u32[144,128]{1,0:T(1,128)}', space=vmem, size = 0x12000, scoped, tag = 'internal scratch']
  %s0 = inlined_call_operand.vmem [shape: f32[4,128], index: 0, kind: input, shape index: {}]
  %s1 = inlined_call_operand.vmem [shape: f32[128,4], index: 1, kind: input, shape index: {}]
  %s2 = inlined_call_operand.hbm [shape: f32[4,4], index: 2, kind: output, shape index: {}]
  %s3 = sld [smem:[#allocation0]]
  $region18: #{tpu_custom_call.1} parent=0
    _
  %s5 = ssub.s32 1, %s3
  %s6 = scalar_select 0, %s5, %s3
  $region1: #{tpu_custom_call.1} parent=0
    #allocation2 [shape = 'u8[2048]{0}', space=vmem, size = 0x800, scoped, tag = 'output window, operand 0, single buffered']
    #allocation3 [shape = 's32[1]{0}', space=sflag, size = 0x4, scoped, tag = 'scoped memory for tpu_custom_call.1']
    %7 = vsyncpa [#allocation3], 0
    // Predicated region
    $region2: #{tpu_custom_call.1} parent=1 // pred_check
      _
    $region3: #{tpu_custom_call.1} parent=1 // pred_check_branch
      %9 = sbr.rel (0) target = $region5
    $region4: #{tpu_custom_call.1} parent=1 // pred_region
      _
    $region5: #{tpu_custom_call.1} parent=1 // pred_fallthru
      _
    // Predicated region
    $region6: #{tpu_custom_call.1} parent=1 // pred_check
      _
    $region7: #{tpu_custom_call.1} parent=1 // pred_check_branch
      %11 = sbr.rel (0) target = $region9
    $region8: #{tpu_custom_call.1} parent=1 // pred_region
      _
    $region9: #{tpu_custom_call.1} parent=1 // pred_fallthru
      _
    %v12 = vld [vmem:[%s0] sm:$0xf]
    %v13 = vand.u32 2147483647, %v12
    %v14 = vld [vmem:[%s1] sm:$0xff]
    %v15 = vld [vmem:[%s1 + $0x8] sm:$0xff]
    %v16 = vld [vmem:[%s1 + $0x10] sm:$0xff]
    %v17 = vld [vmem:[%s1 + $0x18] sm:$0xff]
    %v18 = vld [vmem:[%s1 + $0x20] sm:$0xff]
    %v19 = vld [vmem:[%s1 + $0x28] sm:$0xff]
    %v20 = vld [vmem:[%s1 + $0x30] sm:$0xff]
    %v21 = vld [vmem:[%s1 + $0x38] sm:$0xff]
    %v22 = vld [vmem:[%s1 + $0x40] sm:$0xff]
    %v23 = vld [vmem:[%s1 + $0x48] sm:$0xff]
    %v24 = vld [vmem:[%s1 + $0x50] sm:$0xff]
    %v25 = vld [vmem:[%s1 + $0x58] sm:$0xff]
    %v26 = vld [vmem:[%s1 + $0x60] sm:$0xff]
    %v27 = vld [vmem:[%s1 + $0x68] sm:$0xff]
    %v28 = vld [vmem:[%s1 + $0x70] sm:$0xff]
    %v29 = vld [vmem:[%s1 + $0x78] sm:$0xff]
    %30 = vmatprep.subr.mxu0 0.0
    %v31 = vand.u32 %v29, 4294901760
    %32 = vmatpush1.msra.mxu0 %v31
    %33 = vmatprep.subr.mxu0 0.0
    %v34 = vand.u32 %v28, 4294901760
    %35 = vmatpush1.msra.mxu0 %v34
    %36 = vmatprep.subr.mxu0 0.0
    %v37 = vand.u32 %v27, 4294901760
    %38 = vmatpush1.msra.mxu0 %v37
    %39 = vmatprep.subr.mxu0 0.0
    %v40 = vand.u32 %v26, 4294901760
    %41 = vmatpush1.msra.mxu0 %v40
    %42 = vmatprep.subr.mxu0 0.0
    %v43 = vand.u32 %v25, 4294901760
    %44 = vmatpush1.msra.mxu0 %v43
    %45 = vmatprep.subr.mxu0 0.0
    %v46 = vand.u32 %v24, 4294901760
    %47 = vmatpush1.msra.mxu0 %v46
    %48 = vmatprep.subr.mxu0 0.0
    %v49 = vand.u32 %v23, 4294901760
    %50 = vmatpush1.msra.mxu0 %v49
    %51 = vmatprep.subr.mxu0 0.0
    %v52 = vand.u32 %v22, 4294901760
    %53 = vmatpush1.msra.mxu0 %v52
    %54 = vmatprep.subr.mxu0 0.0
    %v55 = vand.u32 %v21, 4294901760
    %56 = vmatpush1.msra.mxu0 %v55
    %57 = vmatprep.subr.mxu0 0.0
    %v58 = vand.u32 %v20, 4294901760
    %59 = vmatpush1.msra.mxu0 %v58
    %60 = vmatprep.subr.mxu0 0.0
    %v61 = vand.u32 %v19, 4294901760
    %62 = vmatpush1.msra.mxu0 %v61
    %63 = vmatprep.subr.mxu0 0.0
    %v64 = vand.u32 %v18, 4294901760
    %65 = vmatpush1.msra.mxu0 %v64
    %66 = vmatprep.subr.mxu0 0.0
    %v67 = vand.u32 %v17, 4294901760
    %68 = vmatpush1.msra.mxu0 %v67
    %69 = vmatprep.subr.mxu0 0.0
    %v70 = vand.u32 %v16, 4294901760
    %71 = vmatpush1.msra.mxu0 %v70
    %72 = vmatprep.subr.mxu0 0.0
    %v73 = vand.u32 %v15, 4294901760
    %74 = vmatpush1.msra.mxu0 %v73
    %75 = vmatprep.subr.mxu0 0.0
    %v76 = vand.u32 %v14, 4294901760
    %77 = vmatpush1.msra.mxu0 %v76
    %78 = vmatprep.subr.mxu0 0.0
    %79 = vmatpush2.msra.mxu0 0.0
    %80 = vmatprep.subr.mxu0 0.0
    %81 = vmatpush2.msra.mxu0 0.0
    %82 = vmatprep.subr.mxu0 0.0
    %83 = vmatpush2.msra.mxu0 0.0
    %84 = vmatprep.subr.mxu0 0.0
    %85 = vmatpush2.msra.mxu0 0.0
    %86 = vmatprep.subr.mxu0 0.0
    %87 = vmatpush2.msra.mxu0 0.0
    %88 = vmatprep.subr.mxu0 0.0
    %89 = vmatpush2.msra.mxu0 0.0
    %90 = vmatprep.subr.mxu0 0.0
    %91 = vmatpush2.msra.mxu0 0.0
    %92 = vmatprep.subr.mxu0 0.0
    %93 = vmatpush2.msra.mxu0 0.0
    %94 = vmatprep.subr.mxu0 0.0
    %95 = vmatpush2.msra.mxu0 0.0
    %96 = vmatprep.subr.mxu0 0.0
    %97 = vmatpush2.msra.mxu0 0.0
    %98 = vmatprep.subr.mxu0 0.0
    %99 = vmatpush2.msra.mxu0 0.0
    %100 = vmatprep.subr.mxu0 0.0
    %101 = vmatpush2.msra.mxu0 0.0
    %102 = vmatprep.subr.mxu0 0.0
    %103 = vmatpush2.msra.mxu0 0.0
    %104 = vmatprep.subr.mxu0 0.0
    %105 = vmatpush2.msra.mxu0 0.0
    %106 = vmatprep.subr.mxu0 0.0
    %107 = vmatpush2.msra.mxu0 0.0
    %108 = vmatprep.subr.mxu0 0.0
    %109 = vmatpush2.msra.mxu0 0.0
    %110 = vmatprep.mubr.f32.mxu0 0.0
    %v111 = vand.u32 %v13, 4294901760
    %v112 = vsub.f32 %v13, %v111
    %v113 = vand.u32 %v112, 4294901760
    %v114 = vsub.f32 %v112, %v113
    %v115 = vand.u32 %v114, 4294901760
    %116 = vmatmul.mubr.f32.gmra.mxu0 %v115
    %v117 = vpop.f32.mrf.mxu0
    %v118 = vadd.f32 0.0, %v117
    %v119 = vpop.f32.mrf.mxu0
    %120 = vdwg.mxu0
    %121 = vmatprep.subr.mxu0 0.0
    %v122 = vand.u32 %v29, 4294901760
    %v123 = vsub.f32 %v29, %v122
    %v124 = vand.u32 %v123, 4294901760
    %v125 = vsub.f32 %v123, %v124
    %v126 = vand.u32 %v125, 4294901760
    %127 = vmatpush1.msra.mxu0 %v126
    %128 = vmatprep.subr.mxu0 0.0
    %v129 = vand.u32 %v28, 4294901760
    %v130 = vsub.f32 %v28, %v129
    %v131 = vand.u32 %v130, 4294901760
    %v132 = vsub.f32 %v130, %v131
    %v133 = vand.u32 %v132, 4294901760
    %134 = vmatpush1.msra.mxu0 %v133
    %135 = vmatprep.subr.mxu0 0.0
    %v136 = vand.u32 %v27, 4294901760
    %v137 = vsub.f32 %v27, %v136
    %v138 = vand.u32 %v137, 4294901760
    %v139 = vsub.f32 %v137, %v138
    %v140 = vand.u32 %v139, 4294901760
    %141 = vmatpush1.msra.mxu0 %v140
    %142 = vmatprep.subr.mxu0 0.0
    %v143 = vand.u32 %v26, 4294901760
    %v144 = vsub.f32 %v26, %v143
    %v145 = vand.u32 %v144, 4294901760
    %v146 = vsub.f32 %v144, %v145
    %v147 = vand.u32 %v146, 4294901760
    %148 = vmatpush1.msra.mxu0 %v147
    %149 = vmatprep.subr.mxu0 0.0
    %v150 = vand.u32 %v25, 4294901760
    %v151 = vsub.f32 %v25, %v150
    %v152 = vand.u32 %v151, 4294901760
    %v153 = vsub.f32 %v151, %v152
    %v154 = vand.u32 %v153, 4294901760
    %155 = vmatpush1.msra.mxu0 %v154
    %156 = vmatprep.subr.mxu0 0.0
    %v157 = vand.u32 %v24, 4294901760
    %v158 = vsub.f32 %v24, %v157
    %v159 = vand.u32 %v158, 4294901760
    %v160 = vsub.f32 %v158, %v159
    %v161 = vand.u32 %v160, 4294901760
    %162 = vmatpush1.msra.mxu0 %v161
    %163 = vmatprep.subr.mxu0 0.0
    %v164 = vand.u32 %v23, 4294901760
    %v165 = vsub.f32 %v23, %v164
    %v166 = vand.u32 %v165, 4294901760
    %v167 = vsub.f32 %v165, %v166
    %v168 = vand.u32 %v167, 4294901760
    %169 = vmatpush1.msra.mxu0 %v168
    %170 = vmatprep.subr.mxu0 0.0
    %v171 = vand.u32 %v22, 4294901760
    %v172 = vsub.f32 %v22, %v171
    %v173 = vand.u32 %v172, 4294901760
    %v174 = vsub.f32 %v172, %v173
    %v175 = vand.u32 %v174, 4294901760
    %176 = vmatpush1.msra.mxu0 %v175
    %177 = vmatprep.subr.mxu0 0.0
    %v178 = vand.u32 %v21, 4294901760
    %v179 = vsub.f32 %v21, %v178
    %v180 = vand.u32 %v179, 4294901760
    %v181 = vsub.f32 %v179, %v180
    %v182 = vand.u32 %v181, 4294901760
    %183 = vmatpush1.msra.mxu0 %v182
    %184 = vmatprep.subr.mxu0 0.0
    %v185 = vand.u32 %v20, 4294901760
    %v186 = vsub.f32 %v20, %v185
    %v187 = vand.u32 %v186, 4294901760
    %v188 = vsub.f32 %v186, %v187
    %v189 = vand.u32 %v188, 4294901760
    %190 = vmatpush1.msra.mxu0 %v189
    %191 = vmatprep.subr.mxu0 0.0
    %v192 = vand.u32 %v19, 4294901760
    %v193 = vsub.f32 %v19, %v192
    %v194 = vand.u32 %v193, 4294901760
    %v195 = vsub.f32 %v193, %v194
    %v196 = vand.u32 %v195, 4294901760
    %197 = vmatpush1.msra.mxu0 %v196
    %198 = vmatprep.subr.mxu0 0.0
    %v199 = vand.u32 %v18, 4294901760
    %v200 = vsub.f32 %v18, %v199
    %v201 = vand.u32 %v200, 4294901760
    %v202 = vsub.f32 %v200, %v201
    %v203 = vand.u32 %v202, 4294901760
    %204 = vmatpush1.msra.mxu0 %v203
    %205 = vmatprep.subr.mxu0 0.0
    %v206 = vand.u32 %v17, 4294901760
    %v207 = vsub.f32 %v17, %v206
    %v208 = vand.u32 %v207, 4294901760
    %v209 = vsub.f32 %v207, %v208
    %v210 = vand.u32 %v209, 4294901760
    %211 = vmatpush1.msra.mxu0 %v210
    %212 = vmatprep.subr.mxu0 0.0
    %v213 = vand.u32 %v16, 4294901760
    %v214 = vsub.f32 %v16, %v213
    %v215 = vand.u32 %v214, 4294901760
    %v216 = vsub.f32 %v214, %v215
    %v217 = vand.u32 %v216, 4294901760
    %218 = vmatpush1.msra.mxu0 %v217
    %219 = vmatprep.subr.mxu0 0.0
    %v220 = vand.u32 %v15, 4294901760
    %v221 = vsub.f32 %v15, %v220
    %v222 = vand.u32 %v221, 4294901760
    %v223 = vsub.f32 %v221, %v222
    %v224 = vand.u32 %v223, 4294901760
    %225 = vmatpush1.msra.mxu0 %v224
    %226 = vmatprep.subr.mxu0 0.0
    %v227 = vand.u32 %v14, 4294901760
    %v228 = vsub.f32 %v14, %v227
    %v229 = vand.u32 %v228, 4294901760
    %v230 = vsub.f32 %v228, %v229
    %v231 = vand.u32 %v230, 4294901760
    %232 = vmatpush1.msra.mxu0 %v231
    %233 = vmatprep.subr.mxu0 0.0
    %234 = vmatpush2.msra.mxu0 0.0
    %235 = vmatprep.subr.mxu0 0.0
    %236 = vmatpush2.msra.mxu0 0.0
    %237 = vmatprep.subr.mxu0 0.0
    %238 = vmatpush2.msra.mxu0 0.0
    %239 = vmatprep.subr.mxu0 0.0
    %240 = vmatpush2.msra.mxu0 0.0
    %241 = vmatprep.subr.mxu0 0.0
    %242 = vmatpush2.msra.mxu0 0.0
    %243 = vmatprep.subr.mxu0 0.0
    %244 = vmatpush2.msra.mxu0 0.0
    %245 = vmatprep.subr.mxu0 0.0
    %246 = vmatpush2.msra.mxu0 0.0
    %247 = vmatprep.subr.mxu0 0.0
    %248 = vmatpush2.msra.mxu0 0.0
    %249 = vmatprep.subr.mxu0 0.0
    %250 = vmatpush2.msra.mxu0 0.0
    %251 = vmatprep.subr.mxu0 0.0
    %252 = vmatpush2.msra.mxu0 0.0
    %253 = vmatprep.subr.mxu0 0.0
    %254 = vmatpush2.msra.mxu0 0.0
    %255 = vmatprep.subr.mxu0 0.0
    %256 = vmatpush2.msra.mxu0 0.0
    %257 = vmatprep.subr.mxu0 0.0
    %258 = vmatpush2.msra.mxu0 0.0
    %259 = vmatprep.subr.mxu0 0.0
    %260 = vmatpush2.msra.mxu0 0.0
    %261 = vmatprep.subr.mxu0 0.0
    %262 = vmatpush2.msra.mxu0 0.0
    %263 = vmatprep.subr.mxu0 0.0
    %264 = vmatpush2.msra.mxu0 0.0
    %265 = vmatprep.mubr.f32.mxu0 0.0
    %v266 = vand.u32 %v13, 4294901760
    %267 = vmatmul.mubr.f32.gmra.mxu0 %v266
    %v268 = vpop.f32.mrf.mxu0
    %v269 = vadd.f32 %v118, %v268
    %v270 = vpop.f32.mrf.mxu0
    %271 = vdwg.mxu0
    %272 = vmatprep.subr.mxu0 0.0
    %v273 = vand.u32 %v29, 4294901760
    %v274 = vsub.f32 %v29, %v273
    %275 = vmatpush1.msra.mxu0 %v274
    %276 = vmatprep.subr.mxu0 0.0
    %v277 = vand.u32 %v28, 4294901760
    %v278 = vsub.f32 %v28, %v277
    %279 = vmatpush1.msra.mxu0 %v278
    %280 = vmatprep.subr.mxu0 0.0
    %v281 = vand.u32 %v27, 4294901760
    %v282 = vsub.f32 %v27, %v281
    %283 = vmatpush1.msra.mxu0 %v282
    %284 = vmatprep.subr.mxu0 0.0
    %v285 = vand.u32 %v26, 4294901760
    %v286 = vsub.f32 %v26, %v285
    %287 = vmatpush1.msra.mxu0 %v286
    %288 = vmatprep.subr.mxu0 0.0
    %v289 = vand.u32 %v25, 4294901760
    %v290 = vsub.f32 %v25, %v289
    %291 = vmatpush1.msra.mxu0 %v290
    %292 = vmatprep.subr.mxu0 0.0
    %v293 = vand.u32 %v24, 4294901760
    %v294 = vsub.f32 %v24, %v293
    %295 = vmatpush1.msra.mxu0 %v294
    %296 = vmatprep.subr.mxu0 0.0
    %v297 = vand.u32 %v23, 4294901760
    %v298 = vsub.f32 %v23, %v297
    %299 = vmatpush1.msra.mxu0 %v298
    %300 = vmatprep.subr.mxu0 0.0
    %v301 = vand.u32 %v22, 4294901760
    %v302 = vsub.f32 %v22, %v301
    %303 = vmatpush1.msra.mxu0 %v302
    %304 = vmatprep.subr.mxu0 0.0
    %v305 = vand.u32 %v21, 4294901760
    %v306 = vsub.f32 %v21, %v305
    %307 = vmatpush1.msra.mxu0 %v306
    %308 = vmatprep.subr.mxu0 0.0
    %v309 = vand.u32 %v20, 4294901760
    %v310 = vsub.f32 %v20, %v309
    %311 = vmatpush1.msra.mxu0 %v310
    %312 = vmatprep.subr.mxu0 0.0
    %v313 = vand.u32 %v19, 4294901760
    %v314 = vsub.f32 %v19, %v313
    %315 = vmatpush1.msra.mxu0 %v314
    %316 = vmatprep.subr.mxu0 0.0
    %v317 = vand.u32 %v18, 4294901760
    %v318 = vsub.f32 %v18, %v317
    %319 = vmatpush1.msra.mxu0 %v318
    %320 = vmatprep.subr.mxu0 0.0
    %v321 = vand.u32 %v17, 4294901760
    %v322 = vsub.f32 %v17, %v321
    %323 = vmatpush1.msra.mxu0 %v322
    %324 = vmatprep.subr.mxu0 0.0
    %v325 = vand.u32 %v16, 4294901760
    %v326 = vsub.f32 %v16, %v325
    %327 = vmatpush1.msra.mxu0 %v326
    %328 = vmatprep.subr.mxu0 0.0
    %v329 = vand.u32 %v15, 4294901760
    %v330 = vsub.f32 %v15, %v329
    %331 = vmatpush1.msra.mxu0 %v330
    %332 = vmatprep.subr.mxu0 0.0
    %v333 = vand.u32 %v14, 4294901760
    %v334 = vsub.f32 %v14, %v333
    %335 = vmatpush1.msra.mxu0 %v334
    %336 = vmatprep.subr.mxu0 0.0
    %337 = vmatpush2.msra.mxu0 0.0
    %338 = vmatprep.subr.mxu0 0.0
    %339 = vmatpush2.msra.mxu0 0.0
    %340 = vmatprep.subr.mxu0 0.0
    %341 = vmatpush2.msra.mxu0 0.0
    %342 = vmatprep.subr.mxu0 0.0
    %343 = vmatpush2.msra.mxu0 0.0
    %344 = vmatprep.subr.mxu0 0.0
    %345 = vmatpush2.msra.mxu0 0.0
    %346 = vmatprep.subr.mxu0 0.0
    %347 = vmatpush2.msra.mxu0 0.0
    %348 = vmatprep.subr.mxu0 0.0
    %349 = vmatpush2.msra.mxu0 0.0
    %350 = vmatprep.subr.mxu0 0.0
    %351 = vmatpush2.msra.mxu0 0.0
    %352 = vmatprep.subr.mxu0 0.0
    %353 = vmatpush2.msra.mxu0 0.0
    %354 = vmatprep.subr.mxu0 0.0
    %355 = vmatpush2.msra.mxu0 0.0
    %356 = vmatprep.subr.mxu0 0.0
    %357 = vmatpush2.msra.mxu0 0.0
    %358 = vmatprep.subr.mxu0 0.0
    %359 = vmatpush2.msra.mxu0 0.0
    %360 = vmatprep.subr.mxu0 0.0
    %361 = vmatpush2.msra.mxu0 0.0
    %362 = vmatprep.subr.mxu0 0.0
    %363 = vmatpush2.msra.mxu0 0.0
    %364 = vmatprep.subr.mxu0 0.0
    %365 = vmatpush2.msra.mxu0 0.0
    %366 = vmatprep.subr.mxu0 0.0
    %367 = vmatpush2.msra.mxu0 0.0
    %368 = vmatprep.mubr.f32.mxu0 0.0
    %v369 = vand.u32 %v13, 4294901760
    %v370 = vsub.f32 %v13, %v369
    %371 = vmatmul.mubr.f32.gmra.mxu0 %v370
    %v372 = vpop.f32.mrf.mxu0
    %v373 = vadd.f32 %v269, %v372
    %v374 = vpop.f32.mrf.mxu0
    %375 = vdwg.mxu0
    %376 = vmatprep.subr.mxu0 0.0
    %v377 = vand.u32 %v29, 4294901760
    %378 = vmatpush1.msra.mxu0 %v377
    %379 = vmatprep.subr.mxu0 0.0
    %v380 = vand.u32 %v28, 4294901760
    %381 = vmatpush1.msra.mxu0 %v380
    %382 = vmatprep.subr.mxu0 0.0
    %v383 = vand.u32 %v27, 4294901760
    %384 = vmatpush1.msra.mxu0 %v383
    %385 = vmatprep.subr.mxu0 0.0
    %v386 = vand.u32 %v26, 4294901760
    %387 = vmatpush1.msra.mxu0 %v386
    %388 = vmatprep.subr.mxu0 0.0
    %v389 = vand.u32 %v25, 4294901760
    %390 = vmatpush1.msra.mxu0 %v389
    %391 = vmatprep.subr.mxu0 0.0
    %v392 = vand.u32 %v24, 4294901760
    %393 = vmatpush1.msra.mxu0 %v392
    %394 = vmatprep.subr.mxu0 0.0
    %v395 = vand.u32 %v23, 4294901760
    %396 = vmatpush1.msra.mxu0 %v395
    %397 = vmatprep.subr.mxu0 0.0
    %v398 = vand.u32 %v22, 4294901760
    %399 = vmatpush1.msra.mxu0 %v398
    %400 = vmatprep.subr.mxu0 0.0
    %v401 = vand.u32 %v21, 4294901760
    %402 = vmatpush1.msra.mxu0 %v401
    %403 = vmatprep.subr.mxu0 0.0
    %v404 = vand.u32 %v20, 4294901760
    %405 = vmatpush1.msra.mxu0 %v404
    %406 = vmatprep.subr.mxu0 0.0
    %v407 = vand.u32 %v19, 4294901760
    %408 = vmatpush1.msra.mxu0 %v407
    %409 = vmatprep.subr.mxu0 0.0
    %v410 = vand.u32 %v18, 4294901760
    %411 = vmatpush1.msra.mxu0 %v410
    %412 = vmatprep.subr.mxu0 0.0
    %v413 = vand.u32 %v17, 4294901760
    %414 = vmatpush1.msra.mxu0 %v413
    %415 = vmatprep.subr.mxu0 0.0
    %v416 = vand.u32 %v16, 4294901760
    %417 = vmatpush1.msra.mxu0 %v416
    %418 = vmatprep.subr.mxu0 0.0
    %v419 = vand.u32 %v15, 4294901760
    %420 = vmatpush1.msra.mxu0 %v419
    %421 = vmatprep.subr.mxu0 0.0
    %v422 = vand.u32 %v14, 4294901760
    %423 = vmatpush1.msra.mxu0 %v422
    %424 = vmatprep.subr.mxu0 0.0
    %425 = vmatpush2.msra.mxu0 0.0
    %426 = vmatprep.subr.mxu0 0.0
    %427 = vmatpush2.msra.mxu0 0.0
    %428 = vmatprep.subr.mxu0 0.0
    %429 = vmatpush2.msra.mxu0 0.0
    %430 = vmatprep.subr.mxu0 0.0
    %431 = vmatpush2.msra.mxu0 0.0
    %432 = vmatprep.subr.mxu0 0.0
    %433 = vmatpush2.msra.mxu0 0.0
    %434 = vmatprep.subr.mxu0 0.0
    %435 = vmatpush2.msra.mxu0 0.0
    %436 = vmatprep.subr.mxu0 0.0
    %437 = vmatpush2.msra.mxu0 0.0
    %438 = vmatprep.subr.mxu0 0.0
    %439 = vmatpush2.msra.mxu0 0.0
    %440 = vmatprep.subr.mxu0 0.0
    %441 = vmatpush2.msra.mxu0 0.0
    %442 = vmatprep.subr.mxu0 0.0
    %443 = vmatpush2.msra.mxu0 0.0
    %444 = vmatprep.subr.mxu0 0.0
    %445 = vmatpush2.msra.mxu0 0.0
    %446 = vmatprep.subr.mxu0 0.0
    %447 = vmatpush2.msra.mxu0 0.0
    %448 = vmatprep.subr.mxu0 0.0
    %449 = vmatpush2.msra.mxu0 0.0
    %450 = vmatprep.subr.mxu0 0.0
    %451 = vmatpush2.msra.mxu0 0.0
    %452 = vmatprep.subr.mxu0 0.0
    %453 = vmatpush2.msra.mxu0 0.0
    %454 = vmatprep.subr.mxu0 0.0
    %455 = vmatpush2.msra.mxu0 0.0
    %456 = vmatprep.mubr.f32.mxu0 0.0
    %v457 = vand.u32 %v13, 4294901760
    %v458 = vsub.f32 %v13, %v457
    %v459 = vand.u32 %v458, 4294901760
    %460 = vmatmul.mubr.f32.gmra.mxu0 %v459
    %v461 = vpop.f32.mrf.mxu0
    %v462 = vadd.f32 %v373, %v461
    %v463 = vpop.f32.mrf.mxu0
    %464 = vdwg.mxu0
    %465 = vmatprep.subr.mxu0 0.0
    %v466 = vand.u32 %v29, 4294901760
    %v467 = vsub.f32 %v29, %v466
    %v468 = vand.u32 %v467, 4294901760
    %469 = vmatpush1.msra.mxu0 %v468
    %470 = vmatprep.subr.mxu0 0.0
    %v471 = vand.u32 %v28, 4294901760
    %v472 = vsub.f32 %v28, %v471
    %v473 = vand.u32 %v472, 4294901760
    %474 = vmatpush1.msra.mxu0 %v473
    %475 = vmatprep.subr.mxu0 0.0
    %v476 = vand.u32 %v27, 4294901760
    %v477 = vsub.f32 %v27, %v476
    %v478 = vand.u32 %v477, 4294901760
    %479 = vmatpush1.msra.mxu0 %v478
    %480 = vmatprep.subr.mxu0 0.0
    %v481 = vand.u32 %v26, 4294901760
    %v482 = vsub.f32 %v26, %v481
    %v483 = vand.u32 %v482, 4294901760
    %484 = vmatpush1.msra.mxu0 %v483
    %485 = vmatprep.subr.mxu0 0.0
    %v486 = vand.u32 %v25, 4294901760
    %v487 = vsub.f32 %v25, %v486
    %v488 = vand.u32 %v487, 4294901760
    %489 = vmatpush1.msra.mxu0 %v488
    %490 = vmatprep.subr.mxu0 0.0
    %v491 = vand.u32 %v24, 4294901760
    %v492 = vsub.f32 %v24, %v491
    %v493 = vand.u32 %v492, 4294901760
    %494 = vmatpush1.msra.mxu0 %v493
    %495 = vmatprep.subr.mxu0 0.0
    %v496 = vand.u32 %v23, 4294901760
    %v497 = vsub.f32 %v23, %v496
    %v498 = vand.u32 %v497, 4294901760
    %499 = vmatpush1.msra.mxu0 %v498
    %500 = vmatprep.subr.mxu0 0.0
    %v501 = vand.u32 %v22, 4294901760
    %v502 = vsub.f32 %v22, %v501
    %v503 = vand.u32 %v502, 4294901760
    %504 = vmatpush1.msra.mxu0 %v503
    %505 = vmatprep.subr.mxu0 0.0
    %v506 = vand.u32 %v21, 4294901760
    %v507 = vsub.f32 %v21, %v506
    %v508 = vand.u32 %v507, 4294901760
    %509 = vmatpush1.msra.mxu0 %v508
    %510 = vmatprep.subr.mxu0 0.0
    %v511 = vand.u32 %v20, 4294901760
    %v512 = vsub.f32 %v20, %v511
    %v513 = vand.u32 %v512, 4294901760
    %514 = vmatpush1.msra.mxu0 %v513
    %515 = vmatprep.subr.mxu0 0.0
    %v516 = vand.u32 %v19, 4294901760
    %v517 = vsub.f32 %v19, %v516
    %v518 = vand.u32 %v517, 4294901760
    %519 = vmatpush1.msra.mxu0 %v518
    %520 = vmatprep.subr.mxu0 0.0
    %v521 = vand.u32 %v18, 4294901760
    %v522 = vsub.f32 %v18, %v521
    %v523 = vand.u32 %v522, 4294901760
    %524 = vmatpush1.msra.mxu0 %v523
    %525 = vmatprep.subr.mxu0 0.0
    %v526 = vand.u32 %v17, 4294901760
    %v527 = vsub.f32 %v17, %v526
    %v528 = vand.u32 %v527, 4294901760
    %529 = vmatpush1.msra.mxu0 %v528
    %530 = vmatprep.subr.mxu0 0.0
    %v531 = vand.u32 %v16, 4294901760
    %v532 = vsub.f32 %v16, %v531
    %v533 = vand.u32 %v532, 4294901760
    %534 = vmatpush1.msra.mxu0 %v533
    %535 = vmatprep.subr.mxu0 0.0
    %v536 = vand.u32 %v15, 4294901760
    %v537 = vsub.f32 %v15, %v536
    %v538 = vand.u32 %v537, 4294901760
    %539 = vmatpush1.msra.mxu0 %v538
    %540 = vmatprep.subr.mxu0 0.0
    %v541 = vand.u32 %v14, 4294901760
    %v542 = vsub.f32 %v14, %v541
    %v543 = vand.u32 %v542, 4294901760
    %544 = vmatpush1.msra.mxu0 %v543
    %545 = vmatprep.subr.mxu0 0.0
    %546 = vmatpush2.msra.mxu0 0.0
    %547 = vmatprep.subr.mxu0 0.0
    %548 = vmatpush2.msra.mxu0 0.0
    %549 = vmatprep.subr.mxu0 0.0
    %550 = vmatpush2.msra.mxu0 0.0
    %551 = vmatprep.subr.mxu0 0.0
    %552 = vmatpush2.msra.mxu0 0.0
    %553 = vmatprep.subr.mxu0 0.0
    %554 = vmatpush2.msra.mxu0 0.0
    %555 = vmatprep.subr.mxu0 0.0
    %556 = vmatpush2.msra.mxu0 0.0
    %557 = vmatprep.subr.mxu0 0.0
    %558 = vmatpush2.msra.mxu0 0.0
    %559 = vmatprep.subr.mxu0 0.0
    %560 = vmatpush2.msra.mxu0 0.0
    %561 = vmatprep.subr.mxu0 0.0
    %562 = vmatpush2.msra.mxu0 0.0
    %563 = vmatprep.subr.mxu0 0.0
    %564 = vmatpush2.msra.mxu0 0.0
    %565 = vmatprep.subr.mxu0 0.0
    %566 = vmatpush2.msra.mxu0 0.0
    %567 = vmatprep.subr.mxu0 0.0
    %568 = vmatpush2.msra.mxu0 0.0
    %569 = vmatprep.subr.mxu0 0.0
    %570 = vmatpush2.msra.mxu0 0.0
    %571 = vmatprep.subr.mxu0 0.0
    %572 = vmatpush2.msra.mxu0 0.0
    %573 = vmatprep.subr.mxu0 0.0
    %574 = vmatpush2.msra.mxu0 0.0
    %575 = vmatprep.subr.mxu0 0.0
    %576 = vmatpush2.msra.mxu0 0.0
    %577 = vmatprep.mubr.f32.mxu0 0.0
    %v578 = vand.u32 %v13, 4294901760
    %579 = vmatmul.mubr.f32.gmra.mxu0 %v578
    %v580 = vpop.f32.mrf.mxu0
    %v581 = vadd.f32 %v462, %v580
    %v582 = vpop.f32.mrf.mxu0
    %583 = vdwg.mxu0
    %584 = vmatprep.subr.mxu0 0.0
    %v585 = vand.u32 %v29, 4294901760
    %586 = vmatpush1.msra.mxu0 %v585
    %587 = vmatprep.subr.mxu0 0.0
    %v588 = vand.u32 %v28, 4294901760
    %589 = vmatpush1.msra.mxu0 %v588
    %590 = vmatprep.subr.mxu0 0.0
    %v591 = vand.u32 %v27, 4294901760
    %592 = vmatpush1.msra.mxu0 %v591
    %593 = vmatprep.subr.mxu0 0.0
    %v594 = vand.u32 %v26, 4294901760
    %595 = vmatpush1.msra.mxu0 %v594
    %596 = vmatprep.subr.mxu0 0.0
    %v597 = vand.u32 %v25, 4294901760
    %598 = vmatpush1.msra.mxu0 %v597
    %599 = vmatprep.subr.mxu0 0.0
    %v600 = vand.u32 %v24, 4294901760
    %601 = vmatpush1.msra.mxu0 %v600
    %602 = vmatprep.subr.mxu0 0.0
    %v603 = vand.u32 %v23, 4294901760
    %604 = vmatpush1.msra.mxu0 %v603
    %605 = vmatprep.subr.mxu0 0.0
    %v606 = vand.u32 %v22, 4294901760
    %607 = vmatpush1.msra.mxu0 %v606
    %608 = vmatprep.subr.mxu0 0.0
    %v609 = vand.u32 %v21, 4294901760
    %610 = vmatpush1.msra.mxu0 %v609
    %611 = vmatprep.subr.mxu0 0.0
    %v612 = vand.u32 %v20, 4294901760
    %613 = vmatpush1.msra.mxu0 %v612
    %614 = vmatprep.subr.mxu0 0.0
    %v615 = vand.u32 %v19, 4294901760
    %616 = vmatpush1.msra.mxu0 %v615
    %617 = vmatprep.subr.mxu0 0.0
    %v618 = vand.u32 %v18, 4294901760
    %619 = vmatpush1.msra.mxu0 %v618
    %620 = vmatprep.subr.mxu0 0.0
    %v621 = vand.u32 %v17, 4294901760
    %622 = vmatpush1.msra.mxu0 %v621
    %623 = vmatprep.subr.mxu0 0.0
    %v624 = vand.u32 %v16, 4294901760
    %625 = vmatpush1.msra.mxu0 %v624
    %626 = vmatprep.subr.mxu0 0.0
    %v627 = vand.u32 %v15, 4294901760
    %628 = vmatpush1.msra.mxu0 %v627
    %629 = vmatprep.subr.mxu0 0.0
    %v630 = vand.u32 %v14, 4294901760
    %631 = vmatpush1.msra.mxu0 %v630
    %632 = vmatprep.subr.mxu0 0.0
    %633 = vmatpush2.msra.mxu0 0.0
    %634 = vmatprep.subr.mxu0 0.0
    %635 = vmatpush2.msra.mxu0 0.0
    %636 = vmatprep.subr.mxu0 0.0
    %637 = vmatpush2.msra.mxu0 0.0
    %638 = vmatprep.subr.mxu0 0.0
    %639 = vmatpush2.msra.mxu0 0.0
    %640 = vmatprep.subr.mxu0 0.0
    %641 = vmatpush2.msra.mxu0 0.0
    %642 = vmatprep.subr.mxu0 0.0
    %643 = vmatpush2.msra.mxu0 0.0
    %644 = vmatprep.subr.mxu0 0.0
    %645 = vmatpush2.msra.mxu0 0.0
    %646 = vmatprep.subr.mxu0 0.0
    %647 = vmatpush2.msra.mxu0 0.0
    %648 = vmatprep.subr.mxu0 0.0
    %649 = vmatpush2.msra.mxu0 0.0
    %650 = vmatprep.subr.mxu0 0.0
    %651 = vmatpush2.msra.mxu0 0.0
    %652 = vmatprep.subr.mxu0 0.0
    %653 = vmatpush2.msra.mxu0 0.0
    %654 = vmatprep.subr.mxu0 0.0
    %655 = vmatpush2.msra.mxu0 0.0
    %656 = vmatprep.subr.mxu0 0.0
    %657 = vmatpush2.msra.mxu0 0.0
    %658 = vmatprep.subr.mxu0 0.0
    %659 = vmatpush2.msra.mxu0 0.0
    %660 = vmatprep.subr.mxu0 0.0
    %661 = vmatpush2.msra.mxu0 0.0
    %662 = vmatprep.subr.mxu0 0.0
    %663 = vmatpush2.msra.mxu0 0.0
    %664 = vmatprep.mubr.f32.mxu0 0.0
    %v665 = vand.u32 %v13, 4294901760
    %666 = vmatmul.mubr.f32.gmra.mxu0 %v665
    %v667 = vpop.f32.mrf.mxu0
    %v668 = vadd.f32 %v581, %v667
    %v669 = vpop.f32.mrf.mxu0
    %670 = vdwg.mxu0
    %vm671 = vcmask 27648
    %672 = vst.msk [vmem:[#allocation2] sm:$0xf] %vm671, %v668
    // Predicated region
    $region10: #{tpu_custom_call.1} parent=1 // pred_check
      _
    $region11: #{tpu_custom_call.1} parent=1 // pred_check_branch
      %674 = sbr.rel (0) target = $region13
    $region12: #{tpu_custom_call.1} parent=1 // pred_region
      %s676 = ssub.s32 64, 64
      %677 = vsyncadd [#allocation3], %s676
      %s679 = sshll.u32 [#allocation2], 4
      %s680 = int_to_ptr.vmem [resolvable:$true] %s679
      %682 = dma.vmem_to_hbm [thread:$0]  %s680, 64, %s2, [#allocation3]
    $region13: #{tpu_custom_call.1} parent=1 // pred_fallthru
      _
    // Predicated region
    $region14: #{tpu_custom_call.1} parent=1 // pred_check
      _
    $region15: #{tpu_custom_call.1} parent=1 // pred_check_branch
      %684 = sbr.rel (0) target = $region17
    $region16: #{tpu_custom_call.1} parent=1 // pred_region
      %685 = dma.done [#allocation3], 64
    $region17: #{tpu_custom_call.1} parent=1 // pred_fallthru
      _
    %686 = vsyncpa [#allocation3], 1

</llo_original>
